<compile_context>
chip_gen: v7x
topology: tpu7x:2x2x1
jax: 0.10.0
libtpu: 0.0.40
codegen_flags: <defaults>
</compile_context>

<pallas_src>
import functools
import math

import numpy as np
import jax
import jax.numpy as jnp
from jax.experimental import pallas as pl
from jax.experimental.pallas import tpu as pltpu


# ----------------------------------------------------------------------------
# Host-side glue: deterministic base-anchor table (tiny, plain numpy).
# ----------------------------------------------------------------------------
def generate_anchors_np(base_size=16, ratios=None, scales=None):
    if ratios is None:
        ratios = np.array([0.5, 1, 2])
    if scales is None:
        scales = np.array([2 ** 0, 2 ** (1 / 3), 2 ** (2 / 3)])
    num_anchors = len(ratios) * len(scales)
    anchors = np.zeros((num_anchors, 4))
    anchors[:, 2:] = base_size * np.tile(scales, (2, len(ratios))).T
    areas = anchors[:, 2] * anchors[:, 3]
    anchors[:, 2] = np.sqrt(areas / np.repeat(ratios, len(scales)))
    anchors[:, 3] = anchors[:, 2] * np.repeat(ratios, len(scales))
    anchors[:, 0::2] -= np.tile(anchors[:, 2] * 0.5, (2, 1)).T
    anchors[:, 1::2] -= np.tile(anchors[:, 3] * 0.5, (2, 1)).T
    return anchors


def shift_np(shape, stride, anchors):
    """Numpy reference only (mirrors the PyTorch module)."""
    shift_x = (np.arange(0, shape[1]) + 0.5) * stride
    shift_y = (np.arange(0, shape[0]) + 0.5) * stride
    shift_x, shift_y = np.meshgrid(shift_x, shift_y)
    shifts = np.vstack(
        (shift_x.ravel(), shift_y.ravel(), shift_x.ravel(), shift_y.ravel())
    ).transpose()
    A = anchors.shape[0]
    K = shifts.shape[0]
    all_anchors = anchors.reshape((1, A, 4)) + shifts.reshape((1, K, 4)).transpose((1, 0, 2))
    return all_anchors.reshape((K * A, 4))


def _round_up(x, m):
    return ((x + m - 1) // m) * m


# ----------------------------------------------------------------------------
# Fused, lane-dense Pallas kernel: all pyramid levels, one output slab.
# ----------------------------------------------------------------------------
def _fused_anchor_kernel(unit_ref, out_ref, *, cells_per_block, cw, levels):
    """
    unit_ref: (block_r, 128) f32 — base anchor value for base_size=1 at this flat slot
              (constant index_map: fetched once).
    out_ref : (block_r, 128) f32 — lane-dense slice of the concatenated output.
    levels  : tuple of (cell_start, fw, stride, size) per pyramid level (static).

    Flat element index = cell * cw + anchor*4 + coord, row-major over (block_r, 128).
    """
    t = pl.program_id(0)
    block_r, nlanes = out_ref.shape

    row = jax.lax.broadcasted_iota(jnp.int32, (block_r, nlanes), 0)
    lane = jax.lax.broadcasted_iota(jnp.int32, (block_r, nlanes), 1)
    flat = row * nlanes + lane                                   # block-local flat index

    # cell_local = flat // cw via exact float floor-div (flat < 2^24 always since
    # block_r*128 <= 258048; the +0.5 offset keeps floor() robust to f32 rounding).
    cell_local = jnp.floor(
        (flat.astype(jnp.float32) + 0.5) * jnp.float32(1.0 / cw)
    ).astype(jnp.int32)

    block_start = t * cells_per_block                            # scalar (SMEM)
    block_end = block_start + cells_per_block
    cell = cell_local + block_start                              # global cell index

    # coord parity == flat parity == lane parity (cw = A*4 is even, 128 is even).
    is_x = jnp.bitwise_and(lane, 1) == 0
    unit = unit_ref[...]

    def level_value(ks, fw, stride, size):
        kl = cell - ks                                           # local cell (may be <0
        if fw == 1:                                              #  on discarded lanes)
            ii = kl
            jj = jnp.zeros_like(kl)
        elif fw & (fw - 1) == 0:                                 # power-of-two width
            sh = fw.bit_length() - 1
            ii = jnp.right_shift(kl, sh)                         # arithmetic shift = floor
            jj = jnp.bitwise_and(kl, fw - 1)
        else:                                                    # general width
            ii = jnp.floor(
                (kl.astype(jnp.float32) + 0.5) * jnp.float32(1.0 / fw)
            ).astype(jnp.int32)
            jj = kl - ii * fw
        sx = (jj.astype(jnp.float32) + 0.5) * jnp.float32(stride)
        sy = (ii.astype(jnp.float32) + 0.5) * jnp.float32(stride)
        return jnp.where(is_x, sx, sy) + unit * jnp.float32(size)

    # Per-block level skipping.  Levels execute in order; for every lane the last
    # level that writes it is the one that owns it (mask = cell >= ks), so the
    # cumulative-overwrite invariant of the original where-chain is preserved.
    n = len(levels)
    for li in range(n):
        ks, fw, st, sz = levels[li]
        ks_next = levels[li + 1][0] if li + 1 < n else None

        def emit(ks=ks, fw=fw, st=st, sz=sz, ks_next=ks_next, first=(li == 0)):
            if first:
                # Level 0: base/full write for any block that touches it.
                def body():
                    out_ref[...] = level_value(ks, fw, st, sz)
                if ks_next is None:
                    body()
                else:
                    pl.when(block_start < ks_next)(body)
            else:
                cond = block_end > ks
                if ks_next is not None:
                    cond = jnp.logical_and(cond, block_start < ks_next)

                def body():
                    out_ref[...] = jnp.where(cell >= ks,
                                             level_value(ks, fw, st, sz),
                                             out_ref[...])
                pl.when(cond)(body)

        emit()


# ----------------------------------------------------------------------------
# Builder: per static shape, construct constants + a jitted device function.
# ----------------------------------------------------------------------------
def _make_anchor_fn(level_params, unit_flat_f32):
    """
    level_params : tuple of (K, fw, stride, size) per pyramid level (static).
    unit_flat_f32: numpy (A*4,) f32 base anchors for base_size=1, flat (a*4 + coord).
    Returns (jitted_fn(unit_pat) -> (1, total_boxes, 4) f32, unit_pat device array).
    """
    cw = int(unit_flat_f32.shape[0])                 # A*4 (= 36 for defaults)

    levels = []
    kcum = 0
    for (K, fw, stride, size) in level_params:
        levels.append((int(kcum), int(fw), float(stride), float(size)))
        kcum += int(K)
    levels = tuple(levels)
    total_cells = kcum
    total_elems = total_cells * cw
    total_boxes = total_cells * (cw // 4)

    # Row alignment: block_r*128 must be a multiple of cw (so the unit pattern is
    # block-periodic) and block_r a multiple of 8 (sublane tiling).
    period_rows = math.lcm(cw, 128) // 128           # 9 rows for cw=36
    row_align = math.lcm(period_rows, 8)             # 72 rows for cw=36
    rows_needed = -(-total_elems // 128)

    # Big tiles (fewer grid steps), but keep grid >= 2 when possible so v7x's two
    # TensorCores can both take "parallel" work.
    max_block_rows = row_align * max(1, 2048 // row_align)   # 2016 rows (~1 MiB f32)
    cap = max_block_rows
    if rows_needed >= 2 * row_align:
        half = (rows_needed // (2 * row_align)) * row_align
        cap = min(max_block_rows, max(row_align, half))
    block_r = min(cap, _round_up(rows_needed, row_align))
    grid = -(-rows_needed // block_r)
    R = grid * block_r
    cells_per_block = (block_r * 128) // cw

    # Host-side constant: base-anchor value per flat slot (block-periodic pattern).
    c = np.arange(block_r * 128, dtype=np.int64) % cw
    unit_pat = jnp.asarray(unit_flat_f32[c].astype(np.float32).reshape(block_r, 128))

    kernel = functools.partial(_fused_anchor_kernel,
                               cells_per_block=cells_per_block,
                               cw=cw, levels=levels)

    def run(unit):
        out = pl.pallas_call(
            kernel,
            out_shape=jax.ShapeDtypeStruct((R, 128), jnp.float32),
            grid=(grid,),
            in_specs=[pl.BlockSpec((block_r, 128), lambda i: (0, 0))],   # fetched once
            out_specs=pl.BlockSpec((block_r, 128), lambda i: (i, 0)),
            compiler_params=pltpu.CompilerParams(
                dimension_semantics=("parallel",)),
        )(unit)
        # Tail trim kept inside the same jit so XLA can fuse it with consumers.
        flat = out.reshape(-1)[:total_elems]
        return flat.reshape(total_boxes, 4)[None, :, :]

    return jax.jit(run), unit_pat


# ----------------------------------------------------------------------------
# Module-equivalent wrapper
# ----------------------------------------------------------------------------
class Anchors:
    def __init__(self, pyramid_levels=None, strides=None, sizes=None,
                 ratios=None, scales=None):
        self.pyramid_levels = [3, 4, 5, 6, 7] if pyramid_levels is None else pyramid_levels
        self.strides = [2 ** x for x in self.pyramid_levels] if strides is None else strides
        self.sizes = [2 ** (x + 2) for x in self.pyramid_levels] if sizes is None else sizes
        self.ratios = np.array([0.5, 1, 2]) if ratios is None else ratios
        self.scales = (np.array([2 ** 0, 2 ** (1 / 3), 2 ** (2 / 3)])
                       if scales is None else scales)
        # Base anchors scale linearly with base_size -> bake a unit table once.
        self._unit_flat = generate_anchors_np(
            base_size=1, ratios=self.ratios, scales=self.scales
        ).astype(np.float32).reshape(-1)
        self._cache = {}   # static spatial shape -> (jitted_fn, unit_pat device array)

    def __call__(self, image):
        # image: (B, C, H, W) — only the (static) spatial shape is consumed.
        image_shape = tuple(int(s) for s in image.shape[2:])
        entry = self._cache.get(image_shape)
        if entry is None:
            img = np.array(image_shape)
            level_params = []
            for idx, p in enumerate(self.pyramid_levels):
                fh = int((img[0] + 2 ** p - 1) // (2 ** p))
                fw = int((img[1] + 2 ** p - 1) // (2 ** p))
                level_params.append((fh * fw, fw,
                                     float(self.strides[idx]), float(self.sizes[idx])))
            entry = _make_anchor_fn(tuple(level_params), self._unit_flat)
            self._cache[image_shape] = entry
        fn, unit_pat = entry
        return fn(unit_pat)                         # (1, total_boxes, 4) float32


# ----------------------------------------------------------------------------
# Main: small deterministic example + reference check
# ----------------------------------------------------------------------------
if __name__ == "__main__":
    key = jax.random.PRNGKey(0)
    image = jax.random.normal(key, (2, 4, 16, 16), dtype=jnp.float32)  # NCHW

    model = Anchors()
    out = model(image)
    out = jax.block_until_ready(out)

    # numpy reference (mirrors the PyTorch module exactly)
    pyramid_levels = [3, 4, 5, 6, 7]
    strides = [2 ** x for x in pyramid_levels]
    sizes = [2 ** (x + 2) for x in pyramid_levels]
    img_shape = np.array(image.shape[2:])
    img_shapes = [(img_shape + 2 ** x - 1) // 2 ** x for x in pyramid_levels]
    ref = np.zeros((0, 4)).astype(np.float32)
    for idx, p in enumerate(pyramid_levels):
        a = generate_anchors_np(base_size=sizes[idx])
        ref = np.append(ref, shift_np(img_shapes[idx], strides[idx], a), axis=0)
    ref = np.expand_dims(ref, axis=0).astype(np.float32)

    assert out.shape == ref.shape, (out.shape, ref.shape)
    assert out.dtype == jnp.float32
    np.testing.assert_allclose(np.asarray(out), ref, rtol=1e-5, atol=1e-4)

    print("KERNEL_OK")
</pallas_src>

<mosaic_0001>
module attributes {stable_mosaic.version = 11 : i64} {
  func.func @_fused_anchor_kernel(%arg0: i32, %arg1: memref<72x128xf32, #tpu.memory_space<vmem>>, %arg2: memref<72x128xf32, #tpu.memory_space<vmem>>) attributes {dimension_semantics = [#tpu.dimension_semantics<parallel>], iteration_bounds = array<i64: 1>, scalar_prefetch = 0 : i64, scratch_operands = 0 : i64, tpu.core_type = #tpu.core_type<tc>, window_params = [{pipeline_mode = #tpu.pipeline_mode<synchronous>, transform_indices = @transform_0, window_bounds = array<i64: 72, 128>}, {transform_indices = @transform_1, window_bounds = array<i64: 72, 128>}]} {
    %0 = tpu.iota {dimensions = array<i32: 0>} : vector<72x128xi32>
    %1 = tpu.iota {dimensions = array<i32: 1>} : vector<72x128xi32>
    %c128_i32 = arith.constant 128 : i32
    %2 = vector.broadcast %c128_i32 : i32 to vector<72x128xi32>
    %3 = arith.muli %0, %2 : vector<72x128xi32>
    %4 = arith.addi %3, %1 : vector<72x128xi32>
    %5 = arith.sitofp %4 : vector<72x128xi32> to vector<72x128xf32>
    %cst = arith.constant 5.000000e-01 : f32
    %6 = vector.broadcast %cst : f32 to vector<72x128xf32>
    %7 = arith.addf %5, %6 : vector<72x128xf32>
    %cst_0 = arith.constant 0.027777778 : f32
    %8 = vector.broadcast %cst_0 : f32 to vector<72x128xf32>
    %9 = arith.mulf %7, %8 : vector<72x128xf32>
    %10 = math.floor %9 : vector<72x128xf32>
    %11 = arith.fptosi %10 : vector<72x128xf32> to vector<72x128xi32>
    %c256_i32 = arith.constant 256 : i32
    %12 = arith.muli %arg0, %c256_i32 : i32
    %c256_i32_1 = arith.constant 256 : i32
    %13 = arith.addi %12, %c256_i32_1 : i32
    %14 = vector.broadcast %12 : i32 to vector<72x128xi32>
    %15 = arith.addi %11, %14 : vector<72x128xi32>
    %c1_i32 = arith.constant 1 : i32
    %16 = vector.broadcast %c1_i32 : i32 to vector<72x128xi32>
    %17 = arith.andi %1, %16 : vector<72x128xi32>
    %c0_i32 = arith.constant 0 : i32
    %18 = vector.broadcast %c0_i32 : i32 to vector<72x128xi32>
    %19 = arith.cmpi eq, %17, %18 : vector<72x128xi32>
    %c0 = arith.constant 0 : index
    %c0_2 = arith.constant 0 : index
    %20 = vector.load %arg1[%c0, %c0_2] : memref<72x128xf32, #tpu.memory_space<vmem>>, vector<72x128xf32>
    %c4_i32 = arith.constant 4 : i32
    %21 = arith.cmpi slt, %12, %c4_i32 : i32
    %22 = arith.extui %21 : i1 to i32
    %c0_i32_3 = arith.constant 0 : i32
    %23 = arith.cmpi ne, %22, %c0_i32_3 : i32
    scf.if %23 {
      %c0_i32_12 = arith.constant 0 : i32
      %42 = vector.broadcast %c0_i32_12 : i32 to vector<72x128xi32>
      %43 = arith.subi %15, %42 : vector<72x128xi32>
      %c1_i32_13 = arith.constant 1 : i32
      %44 = vector.broadcast %c1_i32_13 : i32 to vector<72x128xi32>
      %45 = arith.shrsi %43, %44 : vector<72x128xi32>
      %c1_i32_14 = arith.constant 1 : i32
      %46 = vector.broadcast %c1_i32_14 : i32 to vector<72x128xi32>
      %47 = arith.andi %43, %46 : vector<72x128xi32>
      %48 = arith.sitofp %47 : vector<72x128xi32> to vector<72x128xf32>
      %cst_15 = arith.constant 5.000000e-01 : f32
      %49 = vector.broadcast %cst_15 : f32 to vector<72x128xf32>
      %50 = arith.addf %48, %49 : vector<72x128xf32>
      %cst_16 = arith.constant 8.000000e+00 : f32
      %51 = vector.broadcast %cst_16 : f32 to vector<72x128xf32>
      %52 = arith.mulf %50, %51 : vector<72x128xf32>
      %53 = arith.sitofp %45 : vector<72x128xi32> to vector<72x128xf32>
      %cst_17 = arith.constant 5.000000e-01 : f32
      %54 = vector.broadcast %cst_17 : f32 to vector<72x128xf32>
      %55 = arith.addf %53, %54 : vector<72x128xf32>
      %cst_18 = arith.constant 8.000000e+00 : f32
      %56 = vector.broadcast %cst_18 : f32 to vector<72x128xf32>
      %57 = arith.mulf %55, %56 : vector<72x128xf32>
      %58 = arith.select %19, %52, %57 : vector<72x128xi1>, vector<72x128xf32>
      %cst_19 = arith.constant 3.200000e+01 : f32
      %59 = vector.broadcast %cst_19 : f32 to vector<72x128xf32>
      %60 = arith.mulf %20, %59 : vector<72x128xf32>
      %61 = arith.addf %58, %60 : vector<72x128xf32>
      %c0_20 = arith.constant 0 : index
      %c0_21 = arith.constant 0 : index
      %62 = vector.load %arg2[%c0_20, %c0_21] : memref<72x128xf32, #tpu.memory_space<vmem>>, vector<72x128xf32>
      tpu.vector_store %arg2[%c0_20, %c0_21], %61 {strides = array<i32>} : memref<72x128xf32, #tpu.memory_space<vmem>>, vector<72x128xf32>,
    } else {
    }
    %c4_i32_4 = arith.constant 4 : i32
    %24 = arith.cmpi sgt, %13, %c4_i32_4 : i32
    %c5_i32 = arith.constant 5 : i32
    %25 = arith.cmpi slt, %12, %c5_i32 : i32
    %26 = arith.andi %24, %25 : i1
    %27 = arith.extui %26 : i1 to i32
    %c0_i32_5 = arith.constant 0 : i32
    %28 = arith.cmpi ne, %27, %c0_i32_5 : i32
    scf.if %28 {
      %c4_i32_12 = arith.constant 4 : i32
      %42 = vector.broadcast %c4_i32_12 : i32 to vector<72x128xi32>
      %43 = arith.cmpi sge, %15, %42 : vector<72x128xi32>
      %c4_i32_13 = arith.constant 4 : i32
      %44 = vector.broadcast %c4_i32_13 : i32 to vector<72x128xi32>
      %45 = arith.subi %15, %44 : vector<72x128xi32>
      %c0_i32_14 = arith.constant 0 : i32
      %46 = vector.broadcast %c0_i32_14 : i32 to vector<72x128xi32>
      %47 = arith.sitofp %46 : vector<72x128xi32> to vector<72x128xf32>
      %cst_15 = arith.constant 5.000000e-01 : f32
      %48 = vector.broadcast %cst_15 : f32 to vector<72x128xf32>
      %49 = arith.addf %47, %48 : vector<72x128xf32>
      %cst_16 = arith.constant 1.600000e+01 : f32
      %50 = vector.broadcast %cst_16 : f32 to vector<72x128xf32>
      %51 = arith.mulf %49, %50 : vector<72x128xf32>
      %52 = arith.sitofp %45 : vector<72x128xi32> to vector<72x128xf32>
      %cst_17 = arith.constant 5.000000e-01 : f32
      %53 = vector.broadcast %cst_17 : f32 to vector<72x128xf32>
      %54 = arith.addf %52, %53 : vector<72x128xf32>
      %cst_18 = arith.constant 1.600000e+01 : f32
      %55 = vector.broadcast %cst_18 : f32 to vector<72x128xf32>
      %56 = arith.mulf %54, %55 : vector<72x128xf32>
      %57 = arith.select %19, %51, %56 : vector<72x128xi1>, vector<72x128xf32>
      %cst_19 = arith.constant 6.400000e+01 : f32
      %58 = vector.broadcast %cst_19 : f32 to vector<72x128xf32>
      %59 = arith.mulf %20, %58 : vector<72x128xf32>
      %60 = arith.addf %57, %59 : vector<72x128xf32>
      %c0_20 = arith.constant 0 : index
      %c0_21 = arith.constant 0 : index
      %61 = vector.load %arg2[%c0_20, %c0_21] : memref<72x128xf32, #tpu.memory_space<vmem>>, vector<72x128xf32>
      %62 = arith.select %43, %60, %61 : vector<72x128xi1>, vector<72x128xf32>
      %c0_22 = arith.constant 0 : index
      %c0_23 = arith.constant 0 : index
      %63 = vector.load %arg2[%c0_22, %c0_23] : memref<72x128xf32, #tpu.memory_space<vmem>>, vector<72x128xf32>
      tpu.vector_store %arg2[%c0_22, %c0_23], %62 {strides = array<i32>} : memref<72x128xf32, #tpu.memory_space<vmem>>, vector<72x128xf32>,
    } else {
    }
    %c5_i32_6 = arith.constant 5 : i32
    %29 = arith.cmpi sgt, %13, %c5_i32_6 : i32
    %c6_i32 = arith.constant 6 : i32
    %30 = arith.cmpi slt, %12, %c6_i32 : i32
    %31 = arith.andi %29, %30 : i1
    %32 = arith.extui %31 : i1 to i32
    %c0_i32_7 = arith.constant 0 : i32
    %33 = arith.cmpi ne, %32, %c0_i32_7 : i32
    scf.if %33 {
      %c5_i32_12 = arith.constant 5 : i32
      %42 = vector.broadcast %c5_i32_12 : i32 to vector<72x128xi32>
      %43 = arith.cmpi sge, %15, %42 : vector<72x128xi32>
      %c5_i32_13 = arith.constant 5 : i32
      %44 = vector.broadcast %c5_i32_13 : i32 to vector<72x128xi32>
      %45 = arith.subi %15, %44 : vector<72x128xi32>
      %c0_i32_14 = arith.constant 0 : i32
      %46 = vector.broadcast %c0_i32_14 : i32 to vector<72x128xi32>
      %47 = arith.sitofp %46 : vector<72x128xi32> to vector<72x128xf32>
      %cst_15 = arith.constant 5.000000e-01 : f32
      %48 = vector.broadcast %cst_15 : f32 to vector<72x128xf32>
      %49 = arith.addf %47, %48 : vector<72x128xf32>
      %cst_16 = arith.constant 3.200000e+01 : f32
      %50 = vector.broadcast %cst_16 : f32 to vector<72x128xf32>
      %51 = arith.mulf %49, %50 : vector<72x128xf32>
      %52 = arith.sitofp %45 : vector<72x128xi32> to vector<72x128xf32>
      %cst_17 = arith.constant 5.000000e-01 : f32
      %53 = vector.broadcast %cst_17 : f32 to vector<72x128xf32>
      %54 = arith.addf %52, %53 : vector<72x128xf32>
      %cst_18 = arith.constant 3.200000e+01 : f32
      %55 = vector.broadcast %cst_18 : f32 to vector<72x128xf32>
      %56 = arith.mulf %54, %55 : vector<72x128xf32>
      %57 = arith.select %19, %51, %56 : vector<72x128xi1>, vector<72x128xf32>
      %cst_19 = arith.constant 1.280000e+02 : f32
      %58 = vector.broadcast %cst_19 : f32 to vector<72x128xf32>
      %59 = arith.mulf %20, %58 : vector<72x128xf32>
      %60 = arith.addf %57, %59 : vector<72x128xf32>
      %c0_20 = arith.constant 0 : index
      %c0_21 = arith.constant 0 : index
      %61 = vector.load %arg2[%c0_20, %c0_21] : memref<72x128xf32, #tpu.memory_space<vmem>>, vector<72x128xf32>
      %62 = arith.select %43, %60, %61 : vector<72x128xi1>, vector<72x128xf32>
      %c0_22 = arith.constant 0 : index
      %c0_23 = arith.constant 0 : index
      %63 = vector.load %arg2[%c0_22, %c0_23] : memref<72x128xf32, #tpu.memory_space<vmem>>, vector<72x128xf32>
      tpu.vector_store %arg2[%c0_22, %c0_23], %62 {strides = array<i32>} : memref<72x128xf32, #tpu.memory_space<vmem>>, vector<72x128xf32>,
    } else {
    }
    %c6_i32_8 = arith.constant 6 : i32
    %34 = arith.cmpi sgt, %13, %c6_i32_8 : i32
    %c7_i32 = arith.constant 7 : i32
    %35 = arith.cmpi slt, %12, %c7_i32 : i32
    %36 = arith.andi %34, %35 : i1
    %37 = arith.extui %36 : i1 to i32
    %c0_i32_9 = arith.constant 0 : i32
    %38 = arith.cmpi ne, %37, %c0_i32_9 : i32
    scf.if %38 {
      %c6_i32_12 = arith.constant 6 : i32
      %42 = vector.broadcast %c6_i32_12 : i32 to vector<72x128xi32>
      %43 = arith.cmpi sge, %15, %42 : vector<72x128xi32>
      %c6_i32_13 = arith.constant 6 : i32
      %44 = vector.broadcast %c6_i32_13 : i32 to vector<72x128xi32>
      %45 = arith.subi %15, %44 : vector<72x128xi32>
      %c0_i32_14 = arith.constant 0 : i32
      %46 = vector.broadcast %c0_i32_14 : i32 to vector<72x128xi32>
      %47 = arith.sitofp %46 : vector<72x128xi32> to vector<72x128xf32>
      %cst_15 = arith.constant 5.000000e-01 : f32
      %48 = vector.broadcast %cst_15 : f32 to vector<72x128xf32>
      %49 = arith.addf %47, %48 : vector<72x128xf32>
      %cst_16 = arith.constant 6.400000e+01 : f32
      %50 = vector.broadcast %cst_16 : f32 to vector<72x128xf32>
      %51 = arith.mulf %49, %50 : vector<72x128xf32>
      %52 = arith.sitofp %45 : vector<72x128xi32> to vector<72x128xf32>
      %cst_17 = arith.constant 5.000000e-01 : f32
      %53 = vector.broadcast %cst_17 : f32 to vector<72x128xf32>
      %54 = arith.addf %52, %53 : vector<72x128xf32>
      %cst_18 = arith.constant 6.400000e+01 : f32
      %55 = vector.broadcast %cst_18 : f32 to vector<72x128xf32>
      %56 = arith.mulf %54, %55 : vector<72x128xf32>
      %57 = arith.select %19, %51, %56 : vector<72x128xi1>, vector<72x128xf32>
      %cst_19 = arith.constant 2.560000e+02 : f32
      %58 = vector.broadcast %cst_19 : f32 to vector<72x128xf32>
      %59 = arith.mulf %20, %58 : vector<72x128xf32>
      %60 = arith.addf %57, %59 : vector<72x128xf32>
      %c0_20 = arith.constant 0 : index
      %c0_21 = arith.constant 0 : index
      %61 = vector.load %arg2[%c0_20, %c0_21] : memref<72x128xf32, #tpu.memory_space<vmem>>, vector<72x128xf32>
      %62 = arith.select %43, %60, %61 : vector<72x128xi1>, vector<72x128xf32>
      %c0_22 = arith.constant 0 : index
      %c0_23 = arith.constant 0 : index
      %63 = vector.load %arg2[%c0_22, %c0_23] : memref<72x128xf32, #tpu.memory_space<vmem>>, vector<72x128xf32>
      tpu.vector_store %arg2[%c0_22, %c0_23], %62 {strides = array<i32>} : memref<72x128xf32, #tpu.memory_space<vmem>>, vector<72x128xf32>,
    } else {
    }
    %c7_i32_10 = arith.constant 7 : i32
    %39 = arith.cmpi sgt, %13, %c7_i32_10 : i32
    %40 = arith.extui %39 : i1 to i32
    %c0_i32_11 = arith.constant 0 : i32
    %41 = arith.cmpi ne, %40, %c0_i32_11 : i32
    scf.if %41 {
      %c7_i32_12 = arith.constant 7 : i32
      %42 = vector.broadcast %c7_i32_12 : i32 to vector<72x128xi32>
      %43 = arith.cmpi sge, %15, %42 : vector<72x128xi32>
      %c7_i32_13 = arith.constant 7 : i32
      %44 = vector.broadcast %c7_i32_13 : i32 to vector<72x128xi32>
      %45 = arith.subi %15, %44 : vector<72x128xi32>
      %c0_i32_14 = arith.constant 0 : i32
      %46 = vector.broadcast %c0_i32_14 : i32 to vector<72x128xi32>
      %47 = arith.sitofp %46 : vector<72x128xi32> to vector<72x128xf32>
      %cst_15 = arith.constant 5.000000e-01 : f32
      %48 = vector.broadcast %cst_15 : f32 to vector<72x128xf32>
      %49 = arith.addf %47, %48 : vector<72x128xf32>
      %cst_16 = arith.constant 1.280000e+02 : f32
      %50 = vector.broadcast %cst_16 : f32 to vector<72x128xf32>
      %51 = arith.mulf %49, %50 : vector<72x128xf32>
      %52 = arith.sitofp %45 : vector<72x128xi32> to vector<72x128xf32>
      %cst_17 = arith.constant 5.000000e-01 : f32
      %53 = vector.broadcast %cst_17 : f32 to vector<72x128xf32>
      %54 = arith.addf %52, %53 : vector<72x128xf32>
      %cst_18 = arith.constant 1.280000e+02 : f32
      %55 = vector.broadcast %cst_18 : f32 to vector<72x128xf32>
      %56 = arith.mulf %54, %55 : vector<72x128xf32>
      %57 = arith.select %19, %51, %56 : vector<72x128xi1>, vector<72x128xf32>
      %cst_19 = arith.constant 5.120000e+02 : f32
      %58 = vector.broadcast %cst_19 : f32 to vector<72x128xf32>
      %59 = arith.mulf %20, %58 : vector<72x128xf32>
      %60 = arith.addf %57, %59 : vector<72x128xf32>
      %c0_20 = arith.constant 0 : index
      %c0_21 = arith.constant 0 : index
      %61 = vector.load %arg2[%c0_20, %c0_21] : memref<72x128xf32, #tpu.memory_space<vmem>>, vector<72x128xf32>
      %62 = arith.select %43, %60, %61 : vector<72x128xi1>, vector<72x128xf32>
      %c0_22 = arith.constant 0 : index
      %c0_23 = arith.constant 0 : index
      %63 = vector.load %arg2[%c0_22, %c0_23] : memref<72x128xf32, #tpu.memory_space<vmem>>, vector<72x128xf32>
      tpu.vector_store %arg2[%c0_22, %c0_23], %62 {strides = array<i32>} : memref<72x128xf32, #tpu.memory_space<vmem>>, vector<72x128xf32>,
    } else {
    }
    return
  }
  func.func @transform_0(%arg0: i32) -> (i32, i32) {
    %c0_i32 = arith.constant 0 : i32
    %c0_i32_0 = arith.constant 0 : i32
    %c0_i32_1 = arith.constant 0 : i32
    return %c0_i32, %c0_i32_0 : i32, i32
  }
  func.func @transform_1(%arg0: i32) -> (i32, i32) {
    %c0_i32 = arith.constant 0 : i32
    %c0_i32_0 = arith.constant 0 : i32
    return %arg0, %c0_i32 : i32, i32
  }
}

</mosaic_0001>

<llo_original>
// kernel: run.1
$region0: #{run.1}
  #allocation0 [shape = 'u32[]', space=smem, size = 0x4, offset = 0x4, fixed_abs, tag = 'smem constant byte address 0x4 - core index']
  #allocation1 [shape = 'u32[144,128]{1,0:T(1,128)}', space=vmem, size = 0x12000, scoped, tag = 'internal scratch']
  %s0 = inlined_call_operand.hbm [shape: f32[72,128], index: 0, kind: input, shape index: {}]
  %s1 = inlined_call_operand.vmem [shape: f32[72,128], index: 1, kind: output, shape index: {}]
  %s2 = sld [smem:[#allocation0]]
  $region38: #{run.1} parent=0
    _
  %s4 = ssub.s32 1, %s2
  %s5 = scalar_select 0, %s4, %s2
  $region1: #{run.1} parent=0
    #allocation2 [shape = 'u8[36864]{0}', space=vmem, size = 0x9000, scoped, tag = 'input window, operand 0, single buffered']
    #allocation3 [shape = 's32[1]{0}', space=sflag, size = 0x4, scoped, tag = 'scoped memory for run.1']
    %6 = vsyncpa [#allocation3], 0
    // Predicated region
    $region2: #{run.1} parent=1 // pred_check
      _
    $region3: #{run.1} parent=1 // pred_check_branch
      %8 = sbr.rel (0) target = $region5
    $region4: #{run.1} parent=1 // pred_region
      %s10 = ssub.s32 1152, 1152
      %11 = vsyncadd [#allocation3], %s10
      %s12 = sshll.u32 [#allocation2], 4
      %s13 = int_to_ptr.vmem [resolvable:$true] %s12
      %18 = dma.hbm_to_vmem [thread:$0]  %s0, 1152, %s13, [#allocation3], 128, 128, 8
    $region5: #{run.1} parent=1 // pred_fallthru
      _
    // Predicated region
    $region6: #{run.1} parent=1 // pred_check
      _
    $region7: #{run.1} parent=1 // pred_check_branch
      %20 = sbr.rel (0) target = $region9
    $region8: #{run.1} parent=1 // pred_region
      %21 = dma.done [#allocation3], 1152
    $region9: #{run.1} parent=1 // pred_fallthru
      _
    %v22 = vlaneseq
    %v23 = vshrl.u32 %v22, 7
    %v24 = vadd.s32 %v23, 8
    %v25 = vadd.s32 %v23, 16
    %v26 = vadd.s32 %v23, 24
    %v27 = vadd.s32 %v23, 32
    %v28 = vadd.s32 %v23, 40
    %v29 = vadd.s32 %v23, 48
    %v30 = vadd.s32 %v23, 56
    %v31 = vadd.s32 %v23, 64
    %v32 = vlaneseq
    %v33 = vand.u32 %v32, 127
    %v34 = vmul.u32 %v23, 128
    %v35 = vmul.u32 %v24, 128
    %v36 = vmul.u32 %v25, 128
    %v37 = vmul.u32 %v26, 128
    %v38 = vmul.u32 %v27, 128
    %v39 = vmul.u32 %v28, 128
    %v40 = vmul.u32 %v29, 128
    %v41 = vmul.u32 %v30, 128
    %v42 = vmul.u32 %v31, 128
    %v43 = vadd.s32 %v34, %v33
    %v44 = vadd.s32 %v35, %v33
    %v45 = vadd.s32 %v36, %v33
    %v46 = vadd.s32 %v37, %v33
    %v47 = vadd.s32 %v38, %v33
    %v48 = vadd.s32 %v39, %v33
    %v49 = vadd.s32 %v40, %v33
    %v50 = vadd.s32 %v41, %v33
    %v51 = vadd.s32 %v42, %v33
    %v52 = vcvt.s32.f32 %v43
    %v53 = vcvt.s32.f32 %v44
    %v54 = vcvt.s32.f32 %v45
    %v55 = vcvt.s32.f32 %v46
    %v56 = vcvt.s32.f32 %v47
    %v57 = vcvt.s32.f32 %v48
    %v58 = vcvt.s32.f32 %v49
    %v59 = vcvt.s32.f32 %v50
    %v60 = vcvt.s32.f32 %v51
    %v61 = vadd.f32 %v52, 0.5
    %v62 = vadd.f32 %v53, 0.5
    %v63 = vadd.f32 %v54, 0.5
    %v64 = vadd.f32 %v55, 0.5
    %v65 = vadd.f32 %v56, 0.5
    %v66 = vadd.f32 %v57, 0.5
    %v67 = vadd.f32 %v58, 0.5
    %v68 = vadd.f32 %v59, 0.5
    %v69 = vadd.f32 %v60, 0.5
    %v70 = vmul.f32 %v61, 0.027777778
    %v71 = vmul.f32 %v62, 0.027777778
    %v72 = vmul.f32 %v63, 0.027777778
    %v73 = vmul.f32 %v64, 0.027777778
    %v74 = vmul.f32 %v65, 0.027777778
    %v75 = vmul.f32 %v66, 0.027777778
    %v76 = vmul.f32 %v67, 0.027777778
    %v77 = vmul.f32 %v68, 0.027777778
    %v78 = vmul.f32 %v69, 0.027777778
    %v79 = vfloor.f32 %v70
    %v80 = vfloor.f32 %v71
    %v81 = vfloor.f32 %v72
    %v82 = vfloor.f32 %v73
    %v83 = vfloor.f32 %v74
    %v84 = vfloor.f32 %v75
    %v85 = vfloor.f32 %v76
    %v86 = vfloor.f32 %v77
    %v87 = vfloor.f32 %v78
    %v88 = vcvt.f32.s32.to.zero.pseudo %v79
    %v89 = vcvt.f32.s32.to.zero.pseudo %v80
    %v90 = vcvt.f32.s32.to.zero.pseudo %v81
    %v91 = vcvt.f32.s32.to.zero.pseudo %v82
    %v92 = vcvt.f32.s32.to.zero.pseudo %v83
    %v93 = vcvt.f32.s32.to.zero.pseudo %v84
    %v94 = vcvt.f32.s32.to.zero.pseudo %v85
    %v95 = vcvt.f32.s32.to.zero.pseudo %v86
    %v96 = vcvt.f32.s32.to.zero.pseudo %v87
    %s97 = smul.u32 0, 256
    %s98 = sadd.s32 %s97, 256
    %v99 = vstv %s97
    %v100 = vadd.s32 %v88, %v99
    %v101 = vadd.s32 %v89, %v99
    %v102 = vadd.s32 %v90, %v99
    %v103 = vadd.s32 %v91, %v99
    %v104 = vadd.s32 %v92, %v99
    %v105 = vadd.s32 %v93, %v99
    %v106 = vadd.s32 %v94, %v99
    %v107 = vadd.s32 %v95, %v99
    %v108 = vadd.s32 %v96, %v99
    %v109 = vand.u32 %v33, 1
    %vm110 = vcmp.eq.s32.totalorder %v109, 0
    %v111 = vld [vmem:[#allocation2] sm:$0xff]
    %v112 = vld [vmem:[#allocation2 + $0x8] sm:$0xff]
    %v113 = vld [vmem:[#allocation2 + $0x10] sm:$0xff]
    %v114 = vld [vmem:[#allocation2 + $0x18] sm:$0xff]
    %v115 = vld [vmem:[#allocation2 + $0x20] sm:$0xff]
    %v116 = vld [vmem:[#allocation2 + $0x28] sm:$0xff]
    %v117 = vld [vmem:[#allocation2 + $0x30] sm:$0xff]
    %v118 = vld [vmem:[#allocation2 + $0x38] sm:$0xff]
    %v119 = vld [vmem:[#allocation2 + $0x40] sm:$0xff]
    %p120 = scmp.lt.s32.totalorder %s97, 4
    // Predicated region
    $region10: #{run.1} parent=1 // pred_check
      %p121 = pneg %p120
    $region11: #{run.1} parent=1 // pred_check_branch
      %123 = sbr.rel (%p121) target = $region13
    $region12: #{run.1} parent=1 // pred_region
      %v124 = vshra.s32 %v100, 1
      %v125 = vshra.s32 %v101, 1
      %v126 = vshra.s32 %v102, 1
      %v127 = vshra.s32 %v103, 1
      %v128 = vshra.s32 %v104, 1
      %v129 = vshra.s32 %v105, 1
      %v130 = vshra.s32 %v106, 1
      %v131 = vshra.s32 %v107, 1
      %v132 = vshra.s32 %v108, 1
      %v133 = vand.u32 %v100, 1
      %v134 = vand.u32 %v101, 1
      %v135 = vand.u32 %v102, 1
      %v136 = vand.u32 %v103, 1
      %v137 = vand.u32 %v104, 1
      %v138 = vand.u32 %v105, 1
      %v139 = vand.u32 %v106, 1
      %v140 = vand.u32 %v107, 1
      %v141 = vand.u32 %v108, 1
      %v142 = vcvt.s32.f32 %v133
      %v143 = vcvt.s32.f32 %v134
      %v144 = vcvt.s32.f32 %v135
      %v145 = vcvt.s32.f32 %v136
      %v146 = vcvt.s32.f32 %v137
      %v147 = vcvt.s32.f32 %v138
      %v148 = vcvt.s32.f32 %v139
      %v149 = vcvt.s32.f32 %v140
      %v150 = vcvt.s32.f32 %v141
      %v151 = vadd.f32 %v142, 0.5
      %v152 = vadd.f32 %v143, 0.5
      %v153 = vadd.f32 %v144, 0.5
      %v154 = vadd.f32 %v145, 0.5
      %v155 = vadd.f32 %v146, 0.5
      %v156 = vadd.f32 %v147, 0.5
      %v157 = vadd.f32 %v148, 0.5
      %v158 = vadd.f32 %v149, 0.5
      %v159 = vadd.f32 %v150, 0.5
      %v160 = vmul.f32 %v151, 8.0
      %v161 = vmul.f32 %v152, 8.0
      %v162 = vmul.f32 %v153, 8.0
      %v163 = vmul.f32 %v154, 8.0
      %v164 = vmul.f32 %v155, 8.0
      %v165 = vmul.f32 %v156, 8.0
      %v166 = vmul.f32 %v157, 8.0
      %v167 = vmul.f32 %v158, 8.0
      %v168 = vmul.f32 %v159, 8.0
      %v169 = vcvt.s32.f32 %v124
      %v170 = vcvt.s32.f32 %v125
      %v171 = vcvt.s32.f32 %v126
      %v172 = vcvt.s32.f32 %v127
      %v173 = vcvt.s32.f32 %v128
      %v174 = vcvt.s32.f32 %v129
      %v175 = vcvt.s32.f32 %v130
      %v176 = vcvt.s32.f32 %v131
      %v177 = vcvt.s32.f32 %v132
      %v178 = vadd.f32 %v169, 0.5
      %v179 = vadd.f32 %v170, 0.5
      %v180 = vadd.f32 %v171, 0.5
      %v181 = vadd.f32 %v172, 0.5
      %v182 = vadd.f32 %v173, 0.5
      %v183 = vadd.f32 %v174, 0.5
      %v184 = vadd.f32 %v175, 0.5
      %v185 = vadd.f32 %v176, 0.5
      %v186 = vadd.f32 %v177, 0.5
      %v187 = vmul.f32 %v178, 8.0
      %v188 = vmul.f32 %v179, 8.0
      %v189 = vmul.f32 %v180, 8.0
      %v190 = vmul.f32 %v181, 8.0
      %v191 = vmul.f32 %v182, 8.0
      %v192 = vmul.f32 %v183, 8.0
      %v193 = vmul.f32 %v184, 8.0
      %v194 = vmul.f32 %v185, 8.0
      %v195 = vmul.f32 %v186, 8.0
      %v196 = vsel %vm110, %v160, %v187
      %v197 = vsel %vm110, %v161, %v188
      %v198 = vsel %vm110, %v162, %v189
      %v199 = vsel %vm110, %v163, %v190
      %v200 = vsel %vm110, %v164, %v191
      %v201 = vsel %vm110, %v165, %v192
      %v202 = vsel %vm110, %v166, %v193
      %v203 = vsel %vm110, %v167, %v194
      %v204 = vsel %vm110, %v168, %v195
      %v205 = vmul.f32 %v111, 32.0
      %v206 = vmul.f32 %v112, 32.0
      %v207 = vmul.f32 %v113, 32.0
      %v208 = vmul.f32 %v114, 32.0
      %v209 = vmul.f32 %v115, 32.0
      %v210 = vmul.f32 %v116, 32.0
      %v211 = vmul.f32 %v117, 32.0
      %v212 = vmul.f32 %v118, 32.0
      %v213 = vmul.f32 %v119, 32.0
      %v214 = vadd.f32 %v196, %v205
      %v215 = vadd.f32 %v197, %v206
      %v216 = vadd.f32 %v198, %v207
      %v217 = vadd.f32 %v199, %v208
      %v218 = vadd.f32 %v200, %v209
      %v219 = vadd.f32 %v201, %v210
      %v220 = vadd.f32 %v202, %v211
      %v221 = vadd.f32 %v203, %v212
      %v222 = vadd.f32 %v204, %v213
      %223 = vst [vmem:[%s1] sm:$0xff] %v214
      %224 = vst [vmem:[%s1 + $0x8] sm:$0xff] %v215
      %225 = vst [vmem:[%s1 + $0x10] sm:$0xff] %v216
      %226 = vst [vmem:[%s1 + $0x18] sm:$0xff] %v217
      %227 = vst [vmem:[%s1 + $0x20] sm:$0xff] %v218
      %228 = vst [vmem:[%s1 + $0x28] sm:$0xff] %v219
      %229 = vst [vmem:[%s1 + $0x30] sm:$0xff] %v220
      %230 = vst [vmem:[%s1 + $0x38] sm:$0xff] %v221
      %231 = vst [vmem:[%s1 + $0x40] sm:$0xff] %v222
    $region13: #{run.1} parent=1 // pred_fallthru
      _
    %p232 = scmp.gt.s32.totalorder %s98, 4
    %p233 = scmp.lt.s32.totalorder %s97, 5
    %p234 = pnand %p232, %p233
    %p235 = pneg %p234
    // Predicated region
    $region14: #{run.1} parent=1 // pred_check
      _
    $region15: #{run.1} parent=1 // pred_check_branch
      %237 = sbr.rel (%p234) target = $region17
    $region16: #{run.1} parent=1 // pred_region
      %vm238 = vcmp.ge.s32.totalorder %v100, 4
      %vm239 = vcmp.ge.s32.totalorder %v101, 4
      %vm240 = vcmp.ge.s32.totalorder %v102, 4
      %vm241 = vcmp.ge.s32.totalorder %v103, 4
      %vm242 = vcmp.ge.s32.totalorder %v104, 4
      %vm243 = vcmp.ge.s32.totalorder %v105, 4
      %vm244 = vcmp.ge.s32.totalorder %v106, 4
      %vm245 = vcmp.ge.s32.totalorder %v107, 4
      %vm246 = vcmp.ge.s32.totalorder %v108, 4
      %v247 = vsub.s32 %v100, 4
      %v248 = vsub.s32 %v101, 4
      %v249 = vsub.s32 %v102, 4
      %v250 = vsub.s32 %v103, 4
      %v251 = vsub.s32 %v104, 4
      %v252 = vsub.s32 %v105, 4
      %v253 = vsub.s32 %v106, 4
      %v254 = vsub.s32 %v107, 4
      %v255 = vsub.s32 %v108, 4
      %v256 = vcvt.s32.f32 %v247
      %v257 = vcvt.s32.f32 %v248
      %v258 = vcvt.s32.f32 %v249
      %v259 = vcvt.s32.f32 %v250
      %v260 = vcvt.s32.f32 %v251
      %v261 = vcvt.s32.f32 %v252
      %v262 = vcvt.s32.f32 %v253
      %v263 = vcvt.s32.f32 %v254
      %v264 = vcvt.s32.f32 %v255
      %v265 = vadd.f32 %v256, 0.5
      %v266 = vadd.f32 %v257, 0.5
      %v267 = vadd.f32 %v258, 0.5
      %v268 = vadd.f32 %v259, 0.5
      %v269 = vadd.f32 %v260, 0.5
      %v270 = vadd.f32 %v261, 0.5
      %v271 = vadd.f32 %v262, 0.5
      %v272 = vadd.f32 %v263, 0.5
      %v273 = vadd.f32 %v264, 0.5
      %v274 = vmul.f32 %v265, 16.0
      %v275 = vmul.f32 %v266, 16.0
      %v276 = vmul.f32 %v267, 16.0
      %v277 = vmul.f32 %v268, 16.0
      %v278 = vmul.f32 %v269, 16.0
      %v279 = vmul.f32 %v270, 16.0
      %v280 = vmul.f32 %v271, 16.0
      %v281 = vmul.f32 %v272, 16.0
      %v282 = vmul.f32 %v273, 16.0
      %v283 = vsel %vm110, 8.0, %v274
      %v284 = vsel %vm110, 8.0, %v275
      %v285 = vsel %vm110, 8.0, %v276
      %v286 = vsel %vm110, 8.0, %v277
      %v287 = vsel %vm110, 8.0, %v278
      %v288 = vsel %vm110, 8.0, %v279
      %v289 = vsel %vm110, 8.0, %v280
      %v290 = vsel %vm110, 8.0, %v281
      %v291 = vsel %vm110, 8.0, %v282
      %v292 = vmul.f32 %v111, 64.0
      %v293 = vmul.f32 %v112, 64.0
      %v294 = vmul.f32 %v113, 64.0
      %v295 = vmul.f32 %v114, 64.0
      %v296 = vmul.f32 %v115, 64.0
      %v297 = vmul.f32 %v116, 64.0
      %v298 = vmul.f32 %v117, 64.0
      %v299 = vmul.f32 %v118, 64.0
      %v300 = vmul.f32 %v119, 64.0
      %v301 = vadd.f32 %v283, %v292
      %v302 = vadd.f32 %v284, %v293
      %v303 = vadd.f32 %v285, %v294
      %v304 = vadd.f32 %v286, %v295
      %v305 = vadd.f32 %v287, %v296
      %v306 = vadd.f32 %v288, %v297
      %v307 = vadd.f32 %v289, %v298
      %v308 = vadd.f32 %v290, %v299
      %v309 = vadd.f32 %v291, %v300
      %v310 = vld [vmem:[%s1] sm:$0xff]
      %v311 = vld [vmem:[%s1 + $0x8] sm:$0xff]
      %v312 = vld [vmem:[%s1 + $0x10] sm:$0xff]
      %v313 = vld [vmem:[%s1 + $0x18] sm:$0xff]
      %v314 = vld [vmem:[%s1 + $0x20] sm:$0xff]
      %v315 = vld [vmem:[%s1 + $0x28] sm:$0xff]
      %v316 = vld [vmem:[%s1 + $0x30] sm:$0xff]
      %v317 = vld [vmem:[%s1 + $0x38] sm:$0xff]
      %v318 = vld [vmem:[%s1 + $0x40] sm:$0xff]
      %v319 = vsel %vm238, %v301, %v310
      %v320 = vsel %vm239, %v302, %v311
      %v321 = vsel %vm240, %v303, %v312
      %v322 = vsel %vm241, %v304, %v313
      %v323 = vsel %vm242, %v305, %v314
      %v324 = vsel %vm243, %v306, %v315
      %v325 = vsel %vm244, %v307, %v316
      %v326 = vsel %vm245, %v308, %v317
      %v327 = vsel %vm246, %v309, %v318
      %328 = vst [vmem:[%s1] sm:$0xff] %v319
      %329 = vst [vmem:[%s1 + $0x8] sm:$0xff] %v320
      %330 = vst [vmem:[%s1 + $0x10] sm:$0xff] %v321
      %331 = vst [vmem:[%s1 + $0x18] sm:$0xff] %v322
      %332 = vst [vmem:[%s1 + $0x20] sm:$0xff] %v323
      %333 = vst [vmem:[%s1 + $0x28] sm:$0xff] %v324
      %334 = vst [vmem:[%s1 + $0x30] sm:$0xff] %v325
      %335 = vst [vmem:[%s1 + $0x38] sm:$0xff] %v326
      %336 = vst [vmem:[%s1 + $0x40] sm:$0xff] %v327
    $region17: #{run.1} parent=1 // pred_fallthru
      _
    %p337 = scmp.gt.s32.totalorder %s98, 5
    %p338 = scmp.lt.s32.totalorder %s97, 6
    %p339 = pnand %p337, %p338
    %p340 = pneg %p339
    // Predicated region
    $region18: #{run.1} parent=1 // pred_check
      _
    $region19: #{run.1} parent=1 // pred_check_branch
      %342 = sbr.rel (%p339) target = $region21
    $region20: #{run.1} parent=1 // pred_region
      %vm343 = vcmp.ge.s32.totalorder %v100, 5
      %vm344 = vcmp.ge.s32.totalorder %v101, 5
      %vm345 = vcmp.ge.s32.totalorder %v102, 5
      %vm346 = vcmp.ge.s32.totalorder %v103, 5
      %vm347 = vcmp.ge.s32.totalorder %v104, 5
      %vm348 = vcmp.ge.s32.totalorder %v105, 5
      %vm349 = vcmp.ge.s32.totalorder %v106, 5
      %vm350 = vcmp.ge.s32.totalorder %v107, 5
      %vm351 = vcmp.ge.s32.totalorder %v108, 5
      %v352 = vsub.s32 %v100, 5
      %v353 = vsub.s32 %v101, 5
      %v354 = vsub.s32 %v102, 5
      %v355 = vsub.s32 %v103, 5
      %v356 = vsub.s32 %v104, 5
      %v357 = vsub.s32 %v105, 5
      %v358 = vsub.s32 %v106, 5
      %v359 = vsub.s32 %v107, 5
      %v360 = vsub.s32 %v108, 5
      %v361 = vcvt.s32.f32 %v352
      %v362 = vcvt.s32.f32 %v353
      %v363 = vcvt.s32.f32 %v354
      %v364 = vcvt.s32.f32 %v355
      %v365 = vcvt.s32.f32 %v356
      %v366 = vcvt.s32.f32 %v357
      %v367 = vcvt.s32.f32 %v358
      %v368 = vcvt.s32.f32 %v359
      %v369 = vcvt.s32.f32 %v360
      %v370 = vadd.f32 %v361, 0.5
      %v371 = vadd.f32 %v362, 0.5
      %v372 = vadd.f32 %v363, 0.5
      %v373 = vadd.f32 %v364, 0.5
      %v374 = vadd.f32 %v365, 0.5
      %v375 = vadd.f32 %v366, 0.5
      %v376 = vadd.f32 %v367, 0.5
      %v377 = vadd.f32 %v368, 0.5
      %v378 = vadd.f32 %v369, 0.5
      %v379 = vmul.f32 %v370, 32.0
      %v380 = vmul.f32 %v371, 32.0
      %v381 = vmul.f32 %v372, 32.0
      %v382 = vmul.f32 %v373, 32.0
      %v383 = vmul.f32 %v374, 32.0
      %v384 = vmul.f32 %v375, 32.0
      %v385 = vmul.f32 %v376, 32.0
      %v386 = vmul.f32 %v377, 32.0
      %v387 = vmul.f32 %v378, 32.0
      %v388 = vsel %vm110, 16.0, %v379
      %v389 = vsel %vm110, 16.0, %v380
      %v390 = vsel %vm110, 16.0, %v381
      %v391 = vsel %vm110, 16.0, %v382
      %v392 = vsel %vm110, 16.0, %v383
      %v393 = vsel %vm110, 16.0, %v384
      %v394 = vsel %vm110, 16.0, %v385
      %v395 = vsel %vm110, 16.0, %v386
      %v396 = vsel %vm110, 16.0, %v387
      %v397 = vmul.f32 %v111, 128.0
      %v398 = vmul.f32 %v112, 128.0
      %v399 = vmul.f32 %v113, 128.0
      %v400 = vmul.f32 %v114, 128.0
      %v401 = vmul.f32 %v115, 128.0
      %v402 = vmul.f32 %v116, 128.0
      %v403 = vmul.f32 %v117, 128.0
      %v404 = vmul.f32 %v118, 128.0
      %v405 = vmul.f32 %v119, 128.0
      %v406 = vadd.f32 %v388, %v397
      %v407 = vadd.f32 %v389, %v398
      %v408 = vadd.f32 %v390, %v399
      %v409 = vadd.f32 %v391, %v400
      %v410 = vadd.f32 %v392, %v401
      %v411 = vadd.f32 %v393, %v402
      %v412 = vadd.f32 %v394, %v403
      %v413 = vadd.f32 %v395, %v404
      %v414 = vadd.f32 %v396, %v405
      %v415 = vld [vmem:[%s1] sm:$0xff]
      %v416 = vld [vmem:[%s1 + $0x8] sm:$0xff]
      %v417 = vld [vmem:[%s1 + $0x10] sm:$0xff]
      %v418 = vld [vmem:[%s1 + $0x18] sm:$0xff]
      %v419 = vld [vmem:[%s1 + $0x20] sm:$0xff]
      %v420 = vld [vmem:[%s1 + $0x28] sm:$0xff]
      %v421 = vld [vmem:[%s1 + $0x30] sm:$0xff]
      %v422 = vld [vmem:[%s1 + $0x38] sm:$0xff]
      %v423 = vld [vmem:[%s1 + $0x40] sm:$0xff]
      %v424 = vsel %vm343, %v406, %v415
      %v425 = vsel %vm344, %v407, %v416
      %v426 = vsel %vm345, %v408, %v417
      %v427 = vsel %vm346, %v409, %v418
      %v428 = vsel %vm347, %v410, %v419
      %v429 = vsel %vm348, %v411, %v420
      %v430 = vsel %vm349, %v412, %v421
      %v431 = vsel %vm350, %v413, %v422
      %v432 = vsel %vm351, %v414, %v423
      %433 = vst [vmem:[%s1] sm:$0xff] %v424
      %434 = vst [vmem:[%s1 + $0x8] sm:$0xff] %v425
      %435 = vst [vmem:[%s1 + $0x10] sm:$0xff] %v426
      %436 = vst [vmem:[%s1 + $0x18] sm:$0xff] %v427
      %437 = vst [vmem:[%s1 + $0x20] sm:$0xff] %v428
      %438 = vst [vmem:[%s1 + $0x28] sm:$0xff] %v429
      %439 = vst [vmem:[%s1 + $0x30] sm:$0xff] %v430
      %440 = vst [vmem:[%s1 + $0x38] sm:$0xff] %v431
      %441 = vst [vmem:[%s1 + $0x40] sm:$0xff] %v432
    $region21: #{run.1} parent=1 // pred_fallthru
      _
    %p442 = scmp.gt.s32.totalorder %s98, 6
    %p443 = scmp.lt.s32.totalorder %s97, 7
    %p444 = pnand %p442, %p443
    %p445 = pneg %p444
    // Predicated region
    $region22: #{run.1} parent=1 // pred_check
      _
    $region23: #{run.1} parent=1 // pred_check_branch
      %447 = sbr.rel (%p444) target = $region25
    $region24: #{run.1} parent=1 // pred_region
      %vm448 = vcmp.ge.s32.totalorder %v100, 6
      %vm449 = vcmp.ge.s32.totalorder %v101, 6
      %vm450 = vcmp.ge.s32.totalorder %v102, 6
      %vm451 = vcmp.ge.s32.totalorder %v103, 6
      %vm452 = vcmp.ge.s32.totalorder %v104, 6
      %vm453 = vcmp.ge.s32.totalorder %v105, 6
      %vm454 = vcmp.ge.s32.totalorder %v106, 6
      %vm455 = vcmp.ge.s32.totalorder %v107, 6
      %vm456 = vcmp.ge.s32.totalorder %v108, 6
      %v457 = vsub.s32 %v100, 6
      %v458 = vsub.s32 %v101, 6
      %v459 = vsub.s32 %v102, 6
      %v460 = vsub.s32 %v103, 6
      %v461 = vsub.s32 %v104, 6
      %v462 = vsub.s32 %v105, 6
      %v463 = vsub.s32 %v106, 6
      %v464 = vsub.s32 %v107, 6
      %v465 = vsub.s32 %v108, 6
      %v466 = vcvt.s32.f32 %v457
      %v467 = vcvt.s32.f32 %v458
      %v468 = vcvt.s32.f32 %v459
      %v469 = vcvt.s32.f32 %v460
      %v470 = vcvt.s32.f32 %v461
      %v471 = vcvt.s32.f32 %v462
      %v472 = vcvt.s32.f32 %v463
      %v473 = vcvt.s32.f32 %v464
      %v474 = vcvt.s32.f32 %v465
      %v475 = vadd.f32 %v466, 0.5
      %v476 = vadd.f32 %v467, 0.5
      %v477 = vadd.f32 %v468, 0.5
      %v478 = vadd.f32 %v469, 0.5
      %v479 = vadd.f32 %v470, 0.5
      %v480 = vadd.f32 %v471, 0.5
      %v481 = vadd.f32 %v472, 0.5
      %v482 = vadd.f32 %v473, 0.5
      %v483 = vadd.f32 %v474, 0.5
      %v484 = vmul.f32 %v475, 64.0
      %v485 = vmul.f32 %v476, 64.0
      %v486 = vmul.f32 %v477, 64.0
      %v487 = vmul.f32 %v478, 64.0
      %v488 = vmul.f32 %v479, 64.0
      %v489 = vmul.f32 %v480, 64.0
      %v490 = vmul.f32 %v481, 64.0
      %v491 = vmul.f32 %v482, 64.0
      %v492 = vmul.f32 %v483, 64.0
      %v493 = vsel %vm110, 32.0, %v484
      %v494 = vsel %vm110, 32.0, %v485
      %v495 = vsel %vm110, 32.0, %v486
      %v496 = vsel %vm110, 32.0, %v487
      %v497 = vsel %vm110, 32.0, %v488
      %v498 = vsel %vm110, 32.0, %v489
      %v499 = vsel %vm110, 32.0, %v490
      %v500 = vsel %vm110, 32.0, %v491
      %v501 = vsel %vm110, 32.0, %v492
      %v502 = vmul.f32 %v111, 256.0
      %v503 = vmul.f32 %v112, 256.0
      %v504 = vmul.f32 %v113, 256.0
      %v505 = vmul.f32 %v114, 256.0
      %v506 = vmul.f32 %v115, 256.0
      %v507 = vmul.f32 %v116, 256.0
      %v508 = vmul.f32 %v117, 256.0
      %v509 = vmul.f32 %v118, 256.0
      %v510 = vmul.f32 %v119, 256.0
      %v511 = vadd.f32 %v493, %v502
      %v512 = vadd.f32 %v494, %v503
      %v513 = vadd.f32 %v495, %v504
      %v514 = vadd.f32 %v496, %v505
      %v515 = vadd.f32 %v497, %v506
      %v516 = vadd.f32 %v498, %v507
      %v517 = vadd.f32 %v499, %v508
      %v518 = vadd.f32 %v500, %v509
      %v519 = vadd.f32 %v501, %v510
      %v520 = vld [vmem:[%s1] sm:$0xff]
      %v521 = vld [vmem:[%s1 + $0x8] sm:$0xff]
      %v522 = vld [vmem:[%s1 + $0x10] sm:$0xff]
      %v523 = vld [vmem:[%s1 + $0x18] sm:$0xff]
      %v524 = vld [vmem:[%s1 + $0x20] sm:$0xff]
      %v525 = vld [vmem:[%s1 + $0x28] sm:$0xff]
      %v526 = vld [vmem:[%s1 + $0x30] sm:$0xff]
      %v527 = vld [vmem:[%s1 + $0x38] sm:$0xff]
      %v528 = vld [vmem:[%s1 + $0x40] sm:$0xff]
      %v529 = vsel %vm448, %v511, %v520
      %v530 = vsel %vm449, %v512, %v521
      %v531 = vsel %vm450, %v513, %v522
      %v532 = vsel %vm451, %v514, %v523
      %v533 = vsel %vm452, %v515, %v524
      %v534 = vsel %vm453, %v516, %v525
      %v535 = vsel %vm454, %v517, %v526
      %v536 = vsel %vm455, %v518, %v527
      %v537 = vsel %vm456, %v519, %v528
      %538 = vst [vmem:[%s1] sm:$0xff] %v529
      %539 = vst [vmem:[%s1 + $0x8] sm:$0xff] %v530
      %540 = vst [vmem:[%s1 + $0x10] sm:$0xff] %v531
      %541 = vst [vmem:[%s1 + $0x18] sm:$0xff] %v532
      %542 = vst [vmem:[%s1 + $0x20] sm:$0xff] %v533
      %543 = vst [vmem:[%s1 + $0x28] sm:$0xff] %v534
      %544 = vst [vmem:[%s1 + $0x30] sm:$0xff] %v535
      %545 = vst [vmem:[%s1 + $0x38] sm:$0xff] %v536
      %546 = vst [vmem:[%s1 + $0x40] sm:$0xff] %v537
    $region25: #{run.1} parent=1 // pred_fallthru
      _
    %p547 = scmp.gt.s32.totalorder %s98, 7
    // Predicated region
    $region26: #{run.1} parent=1 // pred_check
      %p548 = pneg %p547
    $region27: #{run.1} parent=1 // pred_check_branch
      %550 = sbr.rel (%p548) target = $region29
    $region28: #{run.1} parent=1 // pred_region
      %vm551 = vcmp.ge.s32.totalorder %v100, 7
      %vm552 = vcmp.ge.s32.totalorder %v101, 7
      %vm553 = vcmp.ge.s32.totalorder %v102, 7
      %vm554 = vcmp.ge.s32.totalorder %v103, 7
      %vm555 = vcmp.ge.s32.totalorder %v104, 7
      %vm556 = vcmp.ge.s32.totalorder %v105, 7
      %vm557 = vcmp.ge.s32.totalorder %v106, 7
      %vm558 = vcmp.ge.s32.totalorder %v107, 7
      %vm559 = vcmp.ge.s32.totalorder %v108, 7
      %v560 = vsub.s32 %v100, 7
      %v561 = vsub.s32 %v101, 7
      %v562 = vsub.s32 %v102, 7
      %v563 = vsub.s32 %v103, 7
      %v564 = vsub.s32 %v104, 7
      %v565 = vsub.s32 %v105, 7
      %v566 = vsub.s32 %v106, 7
      %v567 = vsub.s32 %v107, 7
      %v568 = vsub.s32 %v108, 7
      %v569 = vcvt.s32.f32 %v560
      %v570 = vcvt.s32.f32 %v561
      %v571 = vcvt.s32.f32 %v562
      %v572 = vcvt.s32.f32 %v563
      %v573 = vcvt.s32.f32 %v564
      %v574 = vcvt.s32.f32 %v565
      %v575 = vcvt.s32.f32 %v566
      %v576 = vcvt.s32.f32 %v567
      %v577 = vcvt.s32.f32 %v568
      %v578 = vadd.f32 %v569, 0.5
      %v579 = vadd.f32 %v570, 0.5
      %v580 = vadd.f32 %v571, 0.5
      %v581 = vadd.f32 %v572, 0.5
      %v582 = vadd.f32 %v573, 0.5
      %v583 = vadd.f32 %v574, 0.5
      %v584 = vadd.f32 %v575, 0.5
      %v585 = vadd.f32 %v576, 0.5
      %v586 = vadd.f32 %v577, 0.5
      %v587 = vmul.f32 %v578, 128.0
      %v588 = vmul.f32 %v579, 128.0
      %v589 = vmul.f32 %v580, 128.0
      %v590 = vmul.f32 %v581, 128.0
      %v591 = vmul.f32 %v582, 128.0
      %v592 = vmul.f32 %v583, 128.0
      %v593 = vmul.f32 %v584, 128.0
      %v594 = vmul.f32 %v585, 128.0
      %v595 = vmul.f32 %v586, 128.0
      %v596 = vsel %vm110, 64.0, %v587
      %v597 = vsel %vm110, 64.0, %v588
      %v598 = vsel %vm110, 64.0, %v589
      %v599 = vsel %vm110, 64.0, %v590
      %v600 = vsel %vm110, 64.0, %v591
      %v601 = vsel %vm110, 64.0, %v592
      %v602 = vsel %vm110, 64.0, %v593
      %v603 = vsel %vm110, 64.0, %v594
      %v604 = vsel %vm110, 64.0, %v595
      %v605 = vmul.f32 %v111, 512.0
      %v606 = vmul.f32 %v112, 512.0
      %v607 = vmul.f32 %v113, 512.0
      %v608 = vmul.f32 %v114, 512.0
      %v609 = vmul.f32 %v115, 512.0
      %v610 = vmul.f32 %v116, 512.0
      %v611 = vmul.f32 %v117, 512.0
      %v612 = vmul.f32 %v118, 512.0
      %v613 = vmul.f32 %v119, 512.0
      %v614 = vadd.f32 %v596, %v605
      %v615 = vadd.f32 %v597, %v606
      %v616 = vadd.f32 %v598, %v607
      %v617 = vadd.f32 %v599, %v608
      %v618 = vadd.f32 %v600, %v609
      %v619 = vadd.f32 %v601, %v610
      %v620 = vadd.f32 %v602, %v611
      %v621 = vadd.f32 %v603, %v612
      %v622 = vadd.f32 %v604, %v613
      %v623 = vld [vmem:[%s1] sm:$0xff]
      %v624 = vld [vmem:[%s1 + $0x8] sm:$0xff]
      %v625 = vld [vmem:[%s1 + $0x10] sm:$0xff]
      %v626 = vld [vmem:[%s1 + $0x18] sm:$0xff]
      %v627 = vld [vmem:[%s1 + $0x20] sm:$0xff]
      %v628 = vld [vmem:[%s1 + $0x28] sm:$0xff]
      %v629 = vld [vmem:[%s1 + $0x30] sm:$0xff]
      %v630 = vld [vmem:[%s1 + $0x38] sm:$0xff]
      %v631 = vld [vmem:[%s1 + $0x40] sm:$0xff]
      %v632 = vsel %vm551, %v614, %v623
      %v633 = vsel %vm552, %v615, %v624
      %v634 = vsel %vm553, %v616, %v625
      %v635 = vsel %vm554, %v617, %v626
      %v636 = vsel %vm555, %v618, %v627
      %v637 = vsel %vm556, %v619, %v628
      %v638 = vsel %vm557, %v620, %v629
      %v639 = vsel %vm558, %v621, %v630
      %v640 = vsel %vm559, %v622, %v631
      %641 = vst [vmem:[%s1] sm:$0xff] %v632
      %642 = vst [vmem:[%s1 + $0x8] sm:$0xff] %v633
      %643 = vst [vmem:[%s1 + $0x10] sm:$0xff] %v634
      %644 = vst [vmem:[%s1 + $0x18] sm:$0xff] %v635
      %645 = vst [vmem:[%s1 + $0x20] sm:$0xff] %v636
      %646 = vst [vmem:[%s1 + $0x28] sm:$0xff] %v637
      %647 = vst [vmem:[%s1 + $0x30] sm:$0xff] %v638
      %648 = vst [vmem:[%s1 + $0x38] sm:$0xff] %v639
      %649 = vst [vmem:[%s1 + $0x40] sm:$0xff] %v640
    $region29: #{run.1} parent=1 // pred_fallthru
      _
    // Predicated region
    $region30: #{run.1} parent=1 // pred_check
      _
    $region31: #{run.1} parent=1 // pred_check_branch
      %651 = sbr.rel (0) target = $region33
    $region32: #{run.1} parent=1 // pred_region
      _
    $region33: #{run.1} parent=1 // pred_fallthru
      _
    // Predicated region
    $region34: #{run.1} parent=1 // pred_check
      _
    $region35: #{run.1} parent=1 // pred_check_branch
      %653 = sbr.rel (0) target = $region37
    $region36: #{run.1} parent=1 // pred_region
      _
    $region37: #{run.1} parent=1 // pred_fallthru
      _
    %654 = vsyncpa [#allocation3], 1

</llo_original>
